<compile_context>
chip_gen: v7x
topology: tpu7x:2x2x1
jax: 0.10.0
libtpu: 0.0.40
codegen_flags: <defaults>
</compile_context>

<pallas_src>
import functools

import jax
import jax.numpy as jnp
from jax.experimental import pallas as pl
from jax.experimental.pallas import tpu as pltpu


def _round_up(n, m):
    return ((n + m - 1) // m) * m


def _mlp_kernel(x_ref, w1_ref, b1_ref, w2_ref, b2_ref, w3_ref, b3_ref, o_ref):
    # Three MXU matmuls (bf16 operands, f32 accumulation) + f32 VPU bias/ReLU.
    x = x_ref[...].astype(jnp.bfloat16)
    h1 = jnp.dot(x, w1_ref[...], preferred_element_type=jnp.float32) + b1_ref[...]
    h1 = jnp.maximum(h1, 0.0)
    h2 = jnp.dot(h1.astype(jnp.bfloat16), w2_ref[...],
                 preferred_element_type=jnp.float32) + b2_ref[...]
    h2 = jnp.maximum(h2, 0.0)
    out = jnp.dot(h2.astype(jnp.bfloat16), w3_ref[...],
                  preferred_element_type=jnp.float32) + b3_ref[...]
    o_ref[...] = out.astype(o_ref.dtype)


def _pad2(a, rows, cols, dtype):
    return jnp.pad(a, ((0, rows - a.shape[0]), (0, cols - a.shape[1]))).astype(dtype)


def prepare_params(params):
    """One-time: pad every feature dim to a multiple of 128 (lane-dense) and cast
    weights to bf16.  Returns (padded_params, (in_size, hid_size, out_size))."""
    w1, b1, w2, b2, w3, b3 = (params[k] for k in ("w1", "b1", "w2", "b2", "w3", "b3"))
    in_size, hid_size = w1.shape
    out_size = w3.shape[1]
    in_pad = _round_up(in_size, 128)
    hid_pad = _round_up(hid_size, 128)
    out_pad = _round_up(out_size, 128)
    padded = {
        "w1": _pad2(w1, in_pad, hid_pad, jnp.bfloat16),
        "b1": _pad2(b1, 1, hid_pad, jnp.float32),
        "w2": _pad2(w2, hid_pad, hid_pad, jnp.bfloat16),
        "b2": _pad2(b2, 1, hid_pad, jnp.float32),
        "w3": _pad2(w3, hid_pad, out_pad, jnp.bfloat16),
        "b3": _pad2(b3, 1, out_pad, jnp.float32),
    }
    return padded, (in_size, hid_size, out_size)


@functools.partial(jax.jit, static_argnames=("out_size", "block_rows"))
def context_embedder(x, padded_params, *, out_size, block_rows=512):
    """x: [batch, input_size] float32.  padded_params: output of prepare_params."""
    p = padded_params
    batch, in_size = x.shape
    in_pad = p["w1"].shape[0]
    out_pad = p["w3"].shape[1]

    # Row tile: multiple of 8, capped by block_rows; batch padded to a tile multiple.
    # (tb=512 f32 rows x 128-wide features keeps double-buffered tiles tiny vs the
    #  32 MiB scoped-VMEM default, so this is safe on v7x's 64 MiB VMEM too.)
    tb = min(_round_up(block_rows, 8), _round_up(batch, 8))
    batch_pad = _round_up(batch, tb)

    x_p = _pad2(x, batch_pad, in_pad, x.dtype)

    grid = (batch_pad // tb,)

    # Weights/biases: same block every grid step -> stay resident in VMEM (no re-DMA).
    resident = lambda a: pl.BlockSpec(a.shape, lambda i: (0, 0))

    hid_pad = p["w1"].shape[1]
    flops = 2 * batch_pad * (in_pad * hid_pad + hid_pad * hid_pad + hid_pad * out_pad)
    bytes_accessed = (
        x_p.size * x_p.dtype.itemsize
        + sum(p[k].size * p[k].dtype.itemsize for k in ("w1", "b1", "w2", "b2", "w3", "b3"))
        + batch_pad * out_pad * x.dtype.itemsize
    )

    y_pad = pl.pallas_call(
        _mlp_kernel,
        out_shape=jax.ShapeDtypeStruct((batch_pad, out_pad), x.dtype),
        grid=grid,
        in_specs=[
            pl.BlockSpec((tb, in_pad), lambda i: (i, 0)),   # streamed activations
            resident(p["w1"]), resident(p["b1"]),
            resident(p["w2"]), resident(p["b2"]),
            resident(p["w3"]), resident(p["b3"]),
        ],
        out_specs=pl.BlockSpec((tb, out_pad), lambda i: (i, 0)),  # lane-dense store
        compiler_params=pltpu.CompilerParams(
            dimension_semantics=("parallel",)),
        cost_estimate=pl.CostEstimate(
            flops=flops, transcendentals=0, bytes_accessed=bytes_accessed),
    )(x_p, p["w1"], p["b1"], p["w2"], p["b2"], p["w3"], p["b3"])

    return y_pad[:batch, :out_size]


def init_params(key, input_size, output_size):
    """Deterministic init mimicking PyTorch nn.Linear default (uniform +/- 1/sqrt(fan_in)).
    Weights stored as [in, out] (transposed relative to PyTorch's [out, in])."""
    hidden = (input_size + output_size) // 2
    ks = jax.random.split(key, 6)

    def lin(kw, kb, fan_in, fan_out):
        bound = 1.0 / jnp.sqrt(fan_in)
        w = jax.random.uniform(kw, (fan_in, fan_out), jnp.float32, -bound, bound)
        b = jax.random.uniform(kb, (1, fan_out), jnp.float32, -bound, bound)
        return w, b

    w1, b1 = lin(ks[0], ks[1], input_size, hidden)
    w2, b2 = lin(ks[2], ks[3], hidden, hidden)
    w3, b3 = lin(ks[4], ks[5], hidden, output_size)
    return {"w1": w1, "b1": b1, "w2": w2, "b2": b2, "w3": w3, "b3": b3}


def context_embedder_ref_f32(x, p):
    h1 = jax.nn.relu(x @ p["w1"] + p["b1"])
    h2 = jax.nn.relu(h1 @ p["w2"] + p["b2"])
    return h2 @ p["w3"] + p["b3"]


def context_embedder_ref_bf16(x, p):
    # Emulates the kernel's precision: bf16 matmul operands, f32 accumulation/elementwise.
    bf = lambda a: a.astype(jnp.bfloat16)
    h1 = jax.nn.relu(jnp.dot(bf(x), bf(p["w1"]), preferred_element_type=jnp.float32) + p["b1"])
    h2 = jax.nn.relu(jnp.dot(bf(h1), bf(p["w2"]), preferred_element_type=jnp.float32) + p["b2"])
    return jnp.dot(bf(h2), bf(p["w3"]), preferred_element_type=jnp.float32) + p["b3"]


if __name__ == "__main__":
    key = jax.random.PRNGKey(0)
    k_param, k_x = jax.random.split(key)

    input_size, output_size, batch = 16, 32, 64
    params = init_params(k_param, input_size, output_size)
    x = jax.random.normal(k_x, (batch, input_size), jnp.float32)

    padded_params, (_, _, out_size) = prepare_params(params)

    out = context_embedder(x, padded_params, out_size=out_size)
    out = jax.block_until_ready(out)
    assert out.shape == (batch, output_size)

    # Tight check vs a reference using the same bf16-operand / f32-accumulate precision.
    ref_bf16 = context_embedder_ref_bf16(x, params)
    assert jnp.allclose(out, ref_bf16, atol=1e-3, rtol=1e-3), "mismatch vs bf16 reference"

    # Loose check vs the full-f32 PyTorch-equivalent reference (bf16 operand rounding).
    ref_f32 = context_embedder_ref_f32(x, params)
    assert jnp.allclose(out, ref_f32, atol=5e-2, rtol=5e-2), "mismatch vs f32 reference"

    print("KERNEL_OK")
</pallas_src>

<mosaic_0001>
module attributes {stable_mosaic.version = 11 : i64} {
  func.func @_mlp_kernel(%arg0: i32, %arg1: memref<64x128xf32, #tpu.memory_space<vmem>>, %arg2: memref<128x128xbf16, #tpu.memory_space<vmem>>, %arg3: memref<1x128xf32, #tpu.memory_space<vmem>>, %arg4: memref<128x128xbf16, #tpu.memory_space<vmem>>, %arg5: memref<1x128xf32, #tpu.memory_space<vmem>>, %arg6: memref<128x128xbf16, #tpu.memory_space<vmem>>, %arg7: memref<1x128xf32, #tpu.memory_space<vmem>>, %arg8: memref<64x128xf32, #tpu.memory_space<vmem>>) attributes {dimension_semantics = [#tpu.dimension_semantics<parallel>], iteration_bounds = array<i64: 1>, scalar_prefetch = 0 : i64, scratch_operands = 0 : i64, tpu.core_type = #tpu.core_type<tc>, window_params = [{transform_indices = @transform_0, window_bounds = array<i64: 64, 128>}, {pipeline_mode = #tpu.pipeline_mode<synchronous>, transform_indices = @transform_1, window_bounds = array<i64: 128, 128>}, {pipeline_mode = #tpu.pipeline_mode<synchronous>, transform_indices = @transform_2, window_bounds = array<i64: 1, 128>}, {pipeline_mode = #tpu.pipeline_mode<synchronous>, transform_indices = @transform_3, window_bounds = array<i64: 128, 128>}, {pipeline_mode = #tpu.pipeline_mode<synchronous>, transform_indices = @transform_4, window_bounds = array<i64: 1, 128>}, {pipeline_mode = #tpu.pipeline_mode<synchronous>, transform_indices = @transform_5, window_bounds = array<i64: 128, 128>}, {pipeline_mode = #tpu.pipeline_mode<synchronous>, transform_indices = @transform_6, window_bounds = array<i64: 1, 128>}, {transform_indices = @transform_7, window_bounds = array<i64: 64, 128>}]} {
    %c0 = arith.constant 0 : index
    %c0_0 = arith.constant 0 : index
    %0 = vector.load %arg1[%c0, %c0_0] : memref<64x128xf32, #tpu.memory_space<vmem>>, vector<64x128xf32>
    %1 = arith.truncf %0 : vector<64x128xf32> to vector<64x128xbf16>
    %c0_1 = arith.constant 0 : index
    %c0_2 = arith.constant 0 : index
    %2 = vector.load %arg2[%c0_1, %c0_2] : memref<128x128xbf16, #tpu.memory_space<vmem>>, vector<128x128xbf16>
    %cst = arith.constant dense<0.000000e+00> : vector<64x128xf32>
    %3 = tpu.matmul %1, %2, %cst {dimension_numbers = #tpu.dot_dimension_numbers<[1], [0], [0], [1], [0, 0, 1, 1], [], []>} : vector<64x128xbf16>, vector<128x128xbf16>, vector<64x128xf32> -> vector<64x128xf32>
    %c0_3 = arith.constant 0 : index
    %c0_4 = arith.constant 0 : index
    %4 = vector.load %arg3[%c0_3, %c0_4] : memref<1x128xf32, #tpu.memory_space<vmem>>, vector<1x128xf32>
    %5 = vector.broadcast %4 : vector<1x128xf32> to vector<64x128xf32>
    %6 = arith.addf %3, %5 : vector<64x128xf32>
    %cst_5 = arith.constant 0.000000e+00 : f32
    %7 = vector.broadcast %cst_5 : f32 to vector<64x128xf32>
    %8 = arith.maximumf %6, %7 : vector<64x128xf32>
    %9 = arith.truncf %8 : vector<64x128xf32> to vector<64x128xbf16>
    %c0_6 = arith.constant 0 : index
    %c0_7 = arith.constant 0 : index
    %10 = vector.load %arg4[%c0_6, %c0_7] : memref<128x128xbf16, #tpu.memory_space<vmem>>, vector<128x128xbf16>
    %cst_8 = arith.constant dense<0.000000e+00> : vector<64x128xf32>
    %11 = tpu.matmul %9, %10, %cst_8 {dimension_numbers = #tpu.dot_dimension_numbers<[1], [0], [0], [1], [0, 0, 1, 1], [], []>} : vector<64x128xbf16>, vector<128x128xbf16>, vector<64x128xf32> -> vector<64x128xf32>
    %c0_9 = arith.constant 0 : index
    %c0_10 = arith.constant 0 : index
    %12 = vector.load %arg5[%c0_9, %c0_10] : memref<1x128xf32, #tpu.memory_space<vmem>>, vector<1x128xf32>
    %13 = vector.broadcast %12 : vector<1x128xf32> to vector<64x128xf32>
    %14 = arith.addf %11, %13 : vector<64x128xf32>
    %cst_11 = arith.constant 0.000000e+00 : f32
    %15 = vector.broadcast %cst_11 : f32 to vector<64x128xf32>
    %16 = arith.maximumf %14, %15 : vector<64x128xf32>
    %17 = arith.truncf %16 : vector<64x128xf32> to vector<64x128xbf16>
    %c0_12 = arith.constant 0 : index
    %c0_13 = arith.constant 0 : index
    %18 = vector.load %arg6[%c0_12, %c0_13] : memref<128x128xbf16, #tpu.memory_space<vmem>>, vector<128x128xbf16>
    %cst_14 = arith.constant dense<0.000000e+00> : vector<64x128xf32>
    %19 = tpu.matmul %17, %18, %cst_14 {dimension_numbers = #tpu.dot_dimension_numbers<[1], [0], [0], [1], [0, 0, 1, 1], [], []>} : vector<64x128xbf16>, vector<128x128xbf16>, vector<64x128xf32> -> vector<64x128xf32>
    %c0_15 = arith.constant 0 : index
    %c0_16 = arith.constant 0 : index
    %20 = vector.load %arg7[%c0_15, %c0_16] : memref<1x128xf32, #tpu.memory_space<vmem>>, vector<1x128xf32>
    %21 = vector.broadcast %20 : vector<1x128xf32> to vector<64x128xf32>
    %22 = arith.addf %19, %21 : vector<64x128xf32>
    %c0_17 = arith.constant 0 : index
    %c0_18 = arith.constant 0 : index
    %23 = vector.load %arg8[%c0_17, %c0_18] : memref<64x128xf32, #tpu.memory_space<vmem>>, vector<64x128xf32>
    tpu.vector_store %arg8[%c0_17, %c0_18], %22 {strides = array<i32>} : memref<64x128xf32, #tpu.memory_space<vmem>>, vector<64x128xf32>,
    return
  }
  func.func @transform_0(%arg0: i32) -> (i32, i32) {
    %c0_i32 = arith.constant 0 : i32
    %c0_i32_0 = arith.constant 0 : i32
    return %arg0, %c0_i32 : i32, i32
  }
  func.func @transform_1(%arg0: i32) -> (i32, i32) {
    %c0_i32 = arith.constant 0 : i32
    %c0_i32_0 = arith.constant 0 : i32
    %c0_i32_1 = arith.constant 0 : i32
    return %c0_i32, %c0_i32_0 : i32, i32
  }
  func.func @transform_2(%arg0: i32) -> (i32, i32) {
    %c0_i32 = arith.constant 0 : i32
    %c0_i32_0 = arith.constant 0 : i32
    %c0_i32_1 = arith.constant 0 : i32
    return %c0_i32, %c0_i32_0 : i32, i32
  }
  func.func @transform_3(%arg0: i32) -> (i32, i32) {
    %c0_i32 = arith.constant 0 : i32
    %c0_i32_0 = arith.constant 0 : i32
    %c0_i32_1 = arith.constant 0 : i32
    return %c0_i32, %c0_i32_0 : i32, i32
  }
  func.func @transform_4(%arg0: i32) -> (i32, i32) {
    %c0_i32 = arith.constant 0 : i32
    %c0_i32_0 = arith.constant 0 : i32
    %c0_i32_1 = arith.constant 0 : i32
    return %c0_i32, %c0_i32_0 : i32, i32
  }
  func.func @transform_5(%arg0: i32) -> (i32, i32) {
    %c0_i32 = arith.constant 0 : i32
    %c0_i32_0 = arith.constant 0 : i32
    %c0_i32_1 = arith.constant 0 : i32
    return %c0_i32, %c0_i32_0 : i32, i32
  }
  func.func @transform_6(%arg0: i32) -> (i32, i32) {
    %c0_i32 = arith.constant 0 : i32
    %c0_i32_0 = arith.constant 0 : i32
    %c0_i32_1 = arith.constant 0 : i32
    return %c0_i32, %c0_i32_0 : i32, i32
  }
  func.func @transform_7(%arg0: i32) -> (i32, i32) {
    %c0_i32 = arith.constant 0 : i32
    %c0_i32_0 = arith.constant 0 : i32
    return %arg0, %c0_i32 : i32, i32
  }
}

</mosaic_0001>

<llo_original>
// kernel: context_embedder.1
$region0: #{context_embedder.1}
  #allocation0 [shape = 'u32[]', space=smem, size = 0x4, offset = 0x4, fixed_abs, tag = 'smem constant byte address 0x4 - core index']
  #allocation1 [shape = 'u32[144,128]{1,0:T(1,128)}', space=vmem, size = 0x12000, scoped, tag = 'internal scratch']
  %s0 = inlined_call_operand.vmem [shape: f32[64,128], index: 0, kind: input, shape index: {}]
  %s1 = inlined_call_operand.vmem [shape: bf16[128,128], index: 1, kind: input, shape index: {}]
  %s2 = inlined_call_operand.vmem [shape: f32[1,128], index: 2, kind: input, shape index: {}]
  %s3 = inlined_call_operand.vmem [shape: bf16[128,128], index: 3, kind: input, shape index: {}]
  %s4 = inlined_call_operand.vmem [shape: f32[1,128], index: 4, kind: input, shape index: {}]
  %s5 = inlined_call_operand.vmem [shape: bf16[128,128], index: 5, kind: input, shape index: {}]
  %s6 = inlined_call_operand.vmem [shape: f32[1,128], index: 6, kind: input, shape index: {}]
  %s7 = inlined_call_operand.vmem [shape: f32[64,128], index: 7, kind: output, shape index: {}]
  %s8 = sld [smem:[#allocation0]]
  $region38: #{context_embedder.1} parent=0
    _
  %s10 = ssub.s32 1, %s8
  %s11 = scalar_select 0, %s10, %s8
  // Predicated region
  $region2: #{context_embedder.1} parent=0 // pred_check
    _
  $region3: #{context_embedder.1} parent=0 // pred_check_branch
    %13 = sbr.rel (0) target = $region5
  $region4: #{context_embedder.1} parent=0 // pred_region
    _
  $region5: #{context_embedder.1} parent=0 // pred_fallthru
    _
  // Predicated region
  $region6: #{context_embedder.1} parent=0 // pred_check
    _
  $region7: #{context_embedder.1} parent=0 // pred_check_branch
    %15 = sbr.rel (0) target = $region9
  $region8: #{context_embedder.1} parent=0 // pred_region
    _
  $region9: #{context_embedder.1} parent=0 // pred_fallthru
    _
  // Predicated region
  $region10: #{context_embedder.1} parent=0 // pred_check
    _
  $region11: #{context_embedder.1} parent=0 // pred_check_branch
    %17 = sbr.rel (0) target = $region13
  $region12: #{context_embedder.1} parent=0 // pred_region
    _
  $region13: #{context_embedder.1} parent=0 // pred_fallthru
    _
  // Predicated region
  $region14: #{context_embedder.1} parent=0 // pred_check
    _
  $region15: #{context_embedder.1} parent=0 // pred_check_branch
    %19 = sbr.rel (0) target = $region17
  $region16: #{context_embedder.1} parent=0 // pred_region
    _
  $region17: #{context_embedder.1} parent=0 // pred_fallthru
    _
  // Predicated region
  $region18: #{context_embedder.1} parent=0 // pred_check
    _
  $region19: #{context_embedder.1} parent=0 // pred_check_branch
    %21 = sbr.rel (0) target = $region21
  $region20: #{context_embedder.1} parent=0 // pred_region
    _
  $region21: #{context_embedder.1} parent=0 // pred_fallthru
    _
  // Predicated region
  $region22: #{context_embedder.1} parent=0 // pred_check
    _
  $region23: #{context_embedder.1} parent=0 // pred_check_branch
    %23 = sbr.rel (0) target = $region25
  $region24: #{context_embedder.1} parent=0 // pred_region
    _
  $region25: #{context_embedder.1} parent=0 // pred_fallthru
    _
  // Predicated region
  $region26: #{context_embedder.1} parent=0 // pred_check
    _
  $region27: #{context_embedder.1} parent=0 // pred_check_branch
    %25 = sbr.rel (0) target = $region29
  $region28: #{context_embedder.1} parent=0 // pred_region
    _
  $region29: #{context_embedder.1} parent=0 // pred_fallthru
    _
  %v27 = vld [vmem:[%s0] sm:$0xff]
  %v28 = vld [vmem:[%s0 + $0x8] sm:$0xff]
  %v29 = vld [vmem:[%s0 + $0x10] sm:$0xff]
  %v30 = vld [vmem:[%s0 + $0x18] sm:$0xff]
  %v31 = vld [vmem:[%s0 + $0x20] sm:$0xff]
  %v32 = vld [vmem:[%s0 + $0x28] sm:$0xff]
  %v33 = vld [vmem:[%s0 + $0x30] sm:$0xff]
  %v34 = vld [vmem:[%s0 + $0x38] sm:$0xff]
  %v35 = vpack.c.bf16 %v28, %v27
  %v36 = vpack.c.bf16 %v30, %v29
  %v37 = vpack.c.bf16 %v32, %v31
  %v38 = vpack.c.bf16 %v34, %v33
  %v39 = vld [vmem:[%s1] sm:$0xf]
  %v40 = vld [vmem:[%s1 + $0x4] sm:$0xf]
  %v41 = vld [vmem:[%s1 + $0x8] sm:$0xf]
  %v42 = vld [vmem:[%s1 + $0xc] sm:$0xf]
  %v43 = vld [vmem:[%s1 + $0x10] sm:$0xf]
  %v44 = vld [vmem:[%s1 + $0x14] sm:$0xf]
  %v45 = vld [vmem:[%s1 + $0x18] sm:$0xf]
  %v46 = vld [vmem:[%s1 + $0x1c] sm:$0xf]
  %v47 = vld [vmem:[%s1 + $0x20] sm:$0xf]
  %v48 = vld [vmem:[%s1 + $0x24] sm:$0xf]
  %v49 = vld [vmem:[%s1 + $0x28] sm:$0xf]
  %v50 = vld [vmem:[%s1 + $0x2c] sm:$0xf]
  %v51 = vld [vmem:[%s1 + $0x30] sm:$0xf]
  %v52 = vld [vmem:[%s1 + $0x34] sm:$0xf]
  %v53 = vld [vmem:[%s1 + $0x38] sm:$0xf]
  %v54 = vld [vmem:[%s1 + $0x3c] sm:$0xf]
  %v55 = vld [vmem:[%s2] sm:$0x1]
  %v57 = vlaneseq
  %v58 = vshrl.u32 %v57, 7
  %v59 = vsub.s32 0, %v58
  %v60 = vrot.slane %v55, %v59
  %v78 = vunpack.c.l.b16 %v39
  %v79 = vunpack.c.l.b16 %v40
  %v80 = vunpack.c.l.b16 %v41
  %v81 = vunpack.c.l.b16 %v42
  %v82 = vunpack.c.l.b16 %v43
  %v83 = vunpack.c.l.b16 %v44
  %v84 = vunpack.c.l.b16 %v45
  %v85 = vunpack.c.l.b16 %v46
  %v86 = vunpack.c.l.b16 %v47
  %v87 = vunpack.c.l.b16 %v48
  %v88 = vunpack.c.l.b16 %v49
  %v89 = vunpack.c.l.b16 %v50
  %v90 = vunpack.c.l.b16 %v51
  %v91 = vunpack.c.l.b16 %v52
  %v92 = vunpack.c.l.b16 %v53
  %v93 = vunpack.c.l.b16 %v54
  %v94 = vpack.c.b16 %v79, %v78
  %v95 = vpack.c.b16 %v81, %v80
  %v96 = vpack.c.b16 %v83, %v82
  %v97 = vpack.c.b16 %v85, %v84
  %v98 = vpack.c.b16 %v87, %v86
  %v99 = vpack.c.b16 %v89, %v88
  %v100 = vpack.c.b16 %v91, %v90
  %v101 = vpack.c.b16 %v93, %v92
  %110 = vmatprep.subr.bf16.mxu0 0
  %111 = vmatpush1.bf16.msra.mxu0 %v94
  %112 = vmatprep.subr.bf16.mxu0 0
  %113 = vmatpush1.bf16.msra.mxu0 %v95
  %114 = vmatprep.subr.bf16.mxu0 0
  %115 = vmatpush1.bf16.msra.mxu0 %v96
  %116 = vmatprep.subr.bf16.mxu0 0
  %117 = vmatpush1.bf16.msra.mxu0 %v97
  %118 = vmatprep.subr.bf16.mxu0 0
  %119 = vmatpush1.bf16.msra.mxu0 %v98
  %120 = vmatprep.subr.bf16.mxu0 0
  %121 = vmatpush1.bf16.msra.mxu0 %v99
  %122 = vmatprep.subr.bf16.mxu0 0
  %123 = vmatpush1.bf16.msra.mxu0 %v100
  %124 = vmatprep.subr.bf16.mxu0 0
  %125 = vmatpush1.bf16.msra.mxu0 %v101
  %126 = vmatprep.subr.bf16.mxu0 0
  %127 = vmatpush1.bf16.msra.mxu0 0
  %128 = vmatprep.subr.bf16.mxu0 0
  %129 = vmatpush1.bf16.msra.mxu0 0
  %130 = vmatprep.subr.bf16.mxu0 0
  %131 = vmatpush1.bf16.msra.mxu0 0
  %132 = vmatprep.subr.bf16.mxu0 0
  %133 = vmatpush1.bf16.msra.mxu0 0
  %134 = vmatprep.subr.bf16.mxu0 0
  %135 = vmatpush1.bf16.msra.mxu0 0
  %136 = vmatprep.subr.bf16.mxu0 0
  %137 = vmatpush1.bf16.msra.mxu0 0
  %138 = vmatprep.subr.bf16.mxu0 0
  %139 = vmatpush1.bf16.msra.mxu0 0
  %140 = vmatprep.subr.bf16.mxu0 0
  %141 = vmatpush1.bf16.msra.mxu0 0
  %142 = vmatprep.mubr.bf16.mxu0 0
  %143 = vmatmul.mubr.bf16.gmra.mrb[0].mxu0 %v35
  %v144 = vpop.f32.mrb[0].mxu0
  %v145 = vadd.f32 %v60, %v144
  %v146 = vpop.f32.mrb[0].mxu0
  %v147 = vpop.f32.mrb[0].mxu0
  %v148 = vadd.f32 %v60, %v147
  %v149 = vpop.f32.mrb[0].mxu0
  %150 = vmatprep.mubr.bf16.mxu0 0
  %151 = vmatmul.mubr.bf16.gmra.mrb[0].mxu0 %v36
  %v152 = vpop.f32.mrb[0].mxu0
  %v153 = vadd.f32 %v60, %v152
  %v154 = vpop.f32.mrb[0].mxu0
  %v155 = vpop.f32.mrb[0].mxu0
  %v156 = vadd.f32 %v60, %v155
  %v157 = vpop.f32.mrb[0].mxu0
  %158 = vmatprep.mubr.bf16.mxu0 0
  %159 = vmatmul.mubr.bf16.gmra.mrb[0].mxu0 %v37
  %v160 = vpop.f32.mrb[0].mxu0
  %v161 = vadd.f32 %v60, %v160
  %v162 = vpop.f32.mrb[0].mxu0
  %v163 = vpop.f32.mrb[0].mxu0
  %v164 = vadd.f32 %v60, %v163
  %v165 = vpop.f32.mrb[0].mxu0
  %166 = vmatprep.mubr.bf16.mxu0 0
  %167 = vmatmul.mubr.bf16.gmra.mrb[0].mxu0 %v38
  %v168 = vpop.f32.mrb[0].mxu0
  %v169 = vadd.f32 %v60, %v168
  %v170 = vpop.f32.mrb[0].mxu0
  %v171 = vpop.f32.mrb[0].mxu0
  %v172 = vadd.f32 %v60, %v171
  %v173 = vpop.f32.mrb[0].mxu0
  %174 = vdwg.mxu0
  %v175 = vmax.f32 %v145, 0.0
  %v176 = vmax.f32 %v148, 0.0
  %v177 = vmax.f32 %v153, 0.0
  %v178 = vmax.f32 %v156, 0.0
  %v179 = vmax.f32 %v161, 0.0
  %v180 = vmax.f32 %v164, 0.0
  %v181 = vmax.f32 %v169, 0.0
  %v182 = vmax.f32 %v172, 0.0
  %v183 = vpack.c.bf16 %v176, %v175
  %v184 = vpack.c.bf16 %v178, %v177
  %v185 = vpack.c.bf16 %v180, %v179
  %v186 = vpack.c.bf16 %v182, %v181
  %v187 = vld [vmem:[%s3] sm:$0xf]
  %v188 = vld [vmem:[%s3 + $0x4] sm:$0xf]
  %v189 = vld [vmem:[%s3 + $0x8] sm:$0xf]
  %v190 = vld [vmem:[%s3 + $0xc] sm:$0xf]
  %v191 = vld [vmem:[%s3 + $0x10] sm:$0xf]
  %v192 = vld [vmem:[%s3 + $0x14] sm:$0xf]
  %v193 = vld [vmem:[%s3 + $0x18] sm:$0xf]
  %v194 = vld [vmem:[%s3 + $0x1c] sm:$0xf]
  %v195 = vld [vmem:[%s3 + $0x20] sm:$0xf]
  %v196 = vld [vmem:[%s3 + $0x24] sm:$0xf]
  %v197 = vld [vmem:[%s3 + $0x28] sm:$0xf]
  %v198 = vld [vmem:[%s3 + $0x2c] sm:$0xf]
  %v199 = vld [vmem:[%s3 + $0x30] sm:$0xf]
  %v200 = vld [vmem:[%s3 + $0x34] sm:$0xf]
  %v201 = vld [vmem:[%s3 + $0x38] sm:$0xf]
  %v202 = vld [vmem:[%s3 + $0x3c] sm:$0xf]
  %v203 = vld [vmem:[%s4] sm:$0x1]
  %v205 = vlaneseq
  %v206 = vshrl.u32 %v205, 7
  %v207 = vsub.s32 0, %v206
  %v208 = vrot.slane %v203, %v207
  %v226 = vunpack.c.l.b16 %v187
  %v227 = vunpack.c.l.b16 %v188
  %v228 = vunpack.c.l.b16 %v189
  %v229 = vunpack.c.l.b16 %v190
  %v230 = vunpack.c.l.b16 %v191
  %v231 = vunpack.c.l.b16 %v192
  %v232 = vunpack.c.l.b16 %v193
  %v233 = vunpack.c.l.b16 %v194
  %v234 = vunpack.c.l.b16 %v195
  %v235 = vunpack.c.l.b16 %v196
  %v236 = vunpack.c.l.b16 %v197
  %v237 = vunpack.c.l.b16 %v198
  %v238 = vunpack.c.l.b16 %v199
  %v239 = vunpack.c.l.b16 %v200
  %v240 = vunpack.c.l.b16 %v201
  %v241 = vunpack.c.l.b16 %v202
  %v242 = vpack.c.b16 %v227, %v226
  %v243 = vpack.c.b16 %v229, %v228
  %v244 = vpack.c.b16 %v231, %v230
  %v245 = vpack.c.b16 %v233, %v232
  %v246 = vpack.c.b16 %v235, %v234
  %v247 = vpack.c.b16 %v237, %v236
  %v248 = vpack.c.b16 %v239, %v238
  %v249 = vpack.c.b16 %v241, %v240
  %258 = vmatprep.subr.bf16.mxu0 0
  %259 = vmatpush1.bf16.msra.mxu0 %v242
  %260 = vmatprep.subr.bf16.mxu0 0
  %261 = vmatpush1.bf16.msra.mxu0 %v243
  %262 = vmatprep.subr.bf16.mxu0 0
  %263 = vmatpush1.bf16.msra.mxu0 %v244
  %264 = vmatprep.subr.bf16.mxu0 0
  %265 = vmatpush1.bf16.msra.mxu0 %v245
  %266 = vmatprep.subr.bf16.mxu0 0
  %267 = vmatpush1.bf16.msra.mxu0 %v246
  %268 = vmatprep.subr.bf16.mxu0 0
  %269 = vmatpush1.bf16.msra.mxu0 %v247
  %270 = vmatprep.subr.bf16.mxu0 0
  %271 = vmatpush1.bf16.msra.mxu0 %v248
  %272 = vmatprep.subr.bf16.mxu0 0
  %273 = vmatpush1.bf16.msra.mxu0 %v249
  %274 = vmatprep.subr.bf16.mxu0 0
  %275 = vmatpush1.bf16.msra.mxu0 0
  %276 = vmatprep.subr.bf16.mxu0 0
  %277 = vmatpush1.bf16.msra.mxu0 0
  %278 = vmatprep.subr.bf16.mxu0 0
  %279 = vmatpush1.bf16.msra.mxu0 0
  %280 = vmatprep.subr.bf16.mxu0 0
  %281 = vmatpush1.bf16.msra.mxu0 0
  %282 = vmatprep.subr.bf16.mxu0 0
  %283 = vmatpush1.bf16.msra.mxu0 0
  %284 = vmatprep.subr.bf16.mxu0 0
  %285 = vmatpush1.bf16.msra.mxu0 0
  %286 = vmatprep.subr.bf16.mxu0 0
  %287 = vmatpush1.bf16.msra.mxu0 0
  %288 = vmatprep.subr.bf16.mxu0 0
  %289 = vmatpush1.bf16.msra.mxu0 0
  %290 = vmatprep.mubr.bf16.mxu0 0
  %291 = vmatmul.mubr.bf16.gmra.mrb[0].mxu0 %v183
  %v292 = vpop.f32.mrb[0].mxu0
  %v293 = vadd.f32 %v208, %v292
  %v294 = vpop.f32.mrb[0].mxu0
  %v295 = vpop.f32.mrb[0].mxu0
  %v296 = vadd.f32 %v208, %v295
  %v297 = vpop.f32.mrb[0].mxu0
  %298 = vmatprep.mubr.bf16.mxu0 0
  %299 = vmatmul.mubr.bf16.gmra.mrb[0].mxu0 %v184
  %v300 = vpop.f32.mrb[0].mxu0
  %v301 = vadd.f32 %v208, %v300
  %v302 = vpop.f32.mrb[0].mxu0
  %v303 = vpop.f32.mrb[0].mxu0
  %v304 = vadd.f32 %v208, %v303
  %v305 = vpop.f32.mrb[0].mxu0
  %306 = vmatprep.mubr.bf16.mxu0 0
  %307 = vmatmul.mubr.bf16.gmra.mrb[0].mxu0 %v185
  %v308 = vpop.f32.mrb[0].mxu0
  %v309 = vadd.f32 %v208, %v308
  %v310 = vpop.f32.mrb[0].mxu0
  %v311 = vpop.f32.mrb[0].mxu0
  %v312 = vadd.f32 %v208, %v311
  %v313 = vpop.f32.mrb[0].mxu0
  %314 = vmatprep.mubr.bf16.mxu0 0
  %315 = vmatmul.mubr.bf16.gmra.mrb[0].mxu0 %v186
  %v316 = vpop.f32.mrb[0].mxu0
  %v317 = vadd.f32 %v208, %v316
  %v318 = vpop.f32.mrb[0].mxu0
  %v319 = vpop.f32.mrb[0].mxu0
  %v320 = vadd.f32 %v208, %v319
  %v321 = vpop.f32.mrb[0].mxu0
  %322 = vdwg.mxu0
  %v323 = vmax.f32 %v293, 0.0
  %v324 = vmax.f32 %v296, 0.0
  %v325 = vmax.f32 %v301, 0.0
  %v326 = vmax.f32 %v304, 0.0
  %v327 = vmax.f32 %v309, 0.0
  %v328 = vmax.f32 %v312, 0.0
  %v329 = vmax.f32 %v317, 0.0
  %v330 = vmax.f32 %v320, 0.0
  %v331 = vpack.c.bf16 %v324, %v323
  %v332 = vpack.c.bf16 %v326, %v325
  %v333 = vpack.c.bf16 %v328, %v327
  %v334 = vpack.c.bf16 %v330, %v329
  %v335 = vld [vmem:[%s5] sm:$0xf]
  %v336 = vld [vmem:[%s5 + $0x4] sm:$0xf]
  %v337 = vld [vmem:[%s5 + $0x8] sm:$0xf]
  %v338 = vld [vmem:[%s5 + $0xc] sm:$0xf]
  %v339 = vld [vmem:[%s5 + $0x10] sm:$0xf]
  %v340 = vld [vmem:[%s5 + $0x14] sm:$0xf]
  %v341 = vld [vmem:[%s5 + $0x18] sm:$0xf]
  %v342 = vld [vmem:[%s5 + $0x1c] sm:$0xf]
  %v343 = vld [vmem:[%s5 + $0x20] sm:$0xf]
  %v344 = vld [vmem:[%s5 + $0x24] sm:$0xf]
  %v345 = vld [vmem:[%s5 + $0x28] sm:$0xf]
  %v346 = vld [vmem:[%s5 + $0x2c] sm:$0xf]
  %v347 = vld [vmem:[%s5 + $0x30] sm:$0xf]
  %v348 = vld [vmem:[%s5 + $0x34] sm:$0xf]
  %v349 = vld [vmem:[%s5 + $0x38] sm:$0xf]
  %v350 = vld [vmem:[%s5 + $0x3c] sm:$0xf]
  %v351 = vld [vmem:[%s6] sm:$0x1]
  %v353 = vlaneseq
  %v354 = vshrl.u32 %v353, 7
  %v355 = vsub.s32 0, %v354
  %v356 = vrot.slane %v351, %v355
  %v374 = vunpack.c.l.b16 %v335
  %v375 = vunpack.c.l.b16 %v336
  %v376 = vunpack.c.l.b16 %v337
  %v377 = vunpack.c.l.b16 %v338
  %v378 = vunpack.c.l.b16 %v339
  %v379 = vunpack.c.l.b16 %v340
  %v380 = vunpack.c.l.b16 %v341
  %v381 = vunpack.c.l.b16 %v342
  %v382 = vunpack.c.l.b16 %v343
  %v383 = vunpack.c.l.b16 %v344
  %v384 = vunpack.c.l.b16 %v345
  %v385 = vunpack.c.l.b16 %v346
  %v386 = vunpack.c.l.b16 %v347
  %v387 = vunpack.c.l.b16 %v348
  %v388 = vunpack.c.l.b16 %v349
  %v389 = vunpack.c.l.b16 %v350
  %v390 = vpack.c.b16 %v375, %v374
  %v391 = vpack.c.b16 %v377, %v376
  %v392 = vpack.c.b16 %v379, %v378
  %v393 = vpack.c.b16 %v381, %v380
  %v394 = vpack.c.b16 %v383, %v382
  %v395 = vpack.c.b16 %v385, %v384
  %v396 = vpack.c.b16 %v387, %v386
  %v397 = vpack.c.b16 %v389, %v388
  %406 = vmatprep.subr.bf16.mxu0 0
  %407 = vmatpush1.bf16.msra.mxu0 %v390
  %408 = vmatprep.subr.bf16.mxu0 0
  %409 = vmatpush1.bf16.msra.mxu0 %v391
  %410 = vmatprep.subr.bf16.mxu0 0
  %411 = vmatpush1.bf16.msra.mxu0 %v392
  %412 = vmatprep.subr.bf16.mxu0 0
  %413 = vmatpush1.bf16.msra.mxu0 %v393
  %414 = vmatprep.subr.bf16.mxu0 0
  %415 = vmatpush1.bf16.msra.mxu0 %v394
  %416 = vmatprep.subr.bf16.mxu0 0
  %417 = vmatpush1.bf16.msra.mxu0 %v395
  %418 = vmatprep.subr.bf16.mxu0 0
  %419 = vmatpush1.bf16.msra.mxu0 %v396
  %420 = vmatprep.subr.bf16.mxu0 0
  %421 = vmatpush1.bf16.msra.mxu0 %v397
  %422 = vmatprep.subr.bf16.mxu0 0
  %423 = vmatpush1.bf16.msra.mxu0 0
  %424 = vmatprep.subr.bf16.mxu0 0
  %425 = vmatpush1.bf16.msra.mxu0 0
  %426 = vmatprep.subr.bf16.mxu0 0
  %427 = vmatpush1.bf16.msra.mxu0 0
  %428 = vmatprep.subr.bf16.mxu0 0
  %429 = vmatpush1.bf16.msra.mxu0 0
  %430 = vmatprep.subr.bf16.mxu0 0
  %431 = vmatpush1.bf16.msra.mxu0 0
  %432 = vmatprep.subr.bf16.mxu0 0
  %433 = vmatpush1.bf16.msra.mxu0 0
  %434 = vmatprep.subr.bf16.mxu0 0
  %435 = vmatpush1.bf16.msra.mxu0 0
  %436 = vmatprep.subr.bf16.mxu0 0
  %437 = vmatpush1.bf16.msra.mxu0 0
  %438 = vmatprep.mubr.bf16.mxu0 0
  %439 = vmatmul.mubr.bf16.gmra.mrb[0].mxu0 %v331
  %v440 = vpop.f32.mrb[0].mxu0
  %v441 = vadd.f32 %v356, %v440
  %v442 = vpop.f32.mrb[0].mxu0
  %v443 = vpop.f32.mrb[0].mxu0
  %v444 = vadd.f32 %v356, %v443
  %v445 = vpop.f32.mrb[0].mxu0
  %446 = vmatprep.mubr.bf16.mxu0 0
  %447 = vmatmul.mubr.bf16.gmra.mrb[0].mxu0 %v332
  %v448 = vpop.f32.mrb[0].mxu0
  %v449 = vadd.f32 %v356, %v448
  %v450 = vpop.f32.mrb[0].mxu0
  %v451 = vpop.f32.mrb[0].mxu0
  %v452 = vadd.f32 %v356, %v451
  %v453 = vpop.f32.mrb[0].mxu0
  %454 = vmatprep.mubr.bf16.mxu0 0
  %455 = vmatmul.mubr.bf16.gmra.mrb[0].mxu0 %v333
  %v456 = vpop.f32.mrb[0].mxu0
  %v457 = vadd.f32 %v356, %v456
  %v458 = vpop.f32.mrb[0].mxu0
  %v459 = vpop.f32.mrb[0].mxu0
  %v460 = vadd.f32 %v356, %v459
  %v461 = vpop.f32.mrb[0].mxu0
  %462 = vmatprep.mubr.bf16.mxu0 0
  %463 = vmatmul.mubr.bf16.gmra.mrb[0].mxu0 %v334
  %v464 = vpop.f32.mrb[0].mxu0
  %v465 = vadd.f32 %v356, %v464
  %v466 = vpop.f32.mrb[0].mxu0
  %v467 = vpop.f32.mrb[0].mxu0
  %v468 = vadd.f32 %v356, %v467
  %v469 = vpop.f32.mrb[0].mxu0
  %470 = vdwg.mxu0
  %471 = vst [vmem:[%s7] sm:$0xff] %v441
  %472 = vst [vmem:[%s7 + $0x8] sm:$0xff] %v444
  %473 = vst [vmem:[%s7 + $0x10] sm:$0xff] %v449
  %474 = vst [vmem:[%s7 + $0x18] sm:$0xff] %v452
  %475 = vst [vmem:[%s7 + $0x20] sm:$0xff] %v457
  %476 = vst [vmem:[%s7 + $0x28] sm:$0xff] %v460
  %477 = vst [vmem:[%s7 + $0x30] sm:$0xff] %v465
  %478 = vst [vmem:[%s7 + $0x38] sm:$0xff] %v468
  // Predicated region
  $region30: #{context_embedder.1} parent=0 // pred_check
    _
  $region31: #{context_embedder.1} parent=0 // pred_check_branch
    %480 = sbr.rel (0) target = $region33
  $region32: #{context_embedder.1} parent=0 // pred_region
    _
  $region33: #{context_embedder.1} parent=0 // pred_fallthru
    _
  // Predicated region
  $region34: #{context_embedder.1} parent=0 // pred_check
    _
  $region35: #{context_embedder.1} parent=0 // pred_check_branch
    %482 = sbr.rel (0) target = $region37
  $region36: #{context_embedder.1} parent=0 // pred_region
    _
  $region37: #{context_embedder.1} parent=0 // pred_fallthru
    _

</llo_original>
